<compile_context>
chip_gen: v5e
topology: v5e:2x2
jax: 0.10.0
libtpu: 0.0.40
codegen_flags: <defaults>
</compile_context>

<pallas_src>
import jax
import jax.numpy as jnp
from jax.experimental import pallas as pl
from jax.experimental.pallas import tpu as pltpu

F = 16           # raw features per side (X is (N, 2*F))
PC = 8           # PCA components
H = 32           # hidden width of each MLP head
NHEAD = 4        # Fx, Fy, Fz, Tz
NH = NHEAD * H   # 128 lanes for the stacked hidden layer
TQ = 128         # left/right samples per grid step (2*TQ = 256 rows per tile)

# ---- weight-slab row offsets (all multiples of 16 -> clean bf16 sublane slices) ----
R_WB1 = 0                  # (F, NH)    x -> base hidden            (scaler+PCA folded in)
R_WM1 = R_WB1 + F          # (F, NH)    x -> meta-hidden PCA term   (scaler+PCA folded in)
R_WOWN = R_WM1 + F         # (NH, NH)   own base hidden   -> meta hidden (bW2 @ mW1own)
R_WOTH = R_WOWN + NH       # (NH, NH)   other base hidden -> meta hidden (bW2 @ mW1oth)
R_MW2 = R_WOTH + NH        # (NH, NH)   meta hidden -> outputs (only cols 0:NHEAD used)
SLAB_ROWS = R_MW2 + NH     # 416

# ---- bias-block rows (kept f32 even when the slab is bf16) ----
B_BB1, B_MB1, B_MB2 = 0, 1, 2
BIAS_ROWS = 8


def stacked_regressor_kernel(x_ref, slab_ref, bias_ref, out_ref):
    """x_ref:    (2*TQ, F) = [TQ left rows; TQ right rows] for one batch tile.
       slab_ref: (SLAB_ROWS, NH) weights (f32 or bf16), VMEM-resident across the grid.
       bias_ref: (BIAS_ROWS, NH) f32 biases, VMEM-resident.
       out_ref:  (2*TQ, NH) f32 (only lanes 0:NHEAD meaningful)."""
    tq = x_ref.shape[0] // 2

    Wb1 = slab_ref[pl.ds(R_WB1, F), :]                          # (F, NH)
    Wm1 = slab_ref[pl.ds(R_WM1, F), :]                          # (F, NH)
    Wmeta = slab_ref[pl.ds(R_WOWN, 2 * NH), :]                  # (2NH, NH) = [W_own; W_oth]
    mW2 = slab_ref[pl.ds(R_MW2, NH), :]                         # (NH, NH)
    wdt = Wb1.dtype

    bb1 = bias_ref[pl.ds(B_BB1, 1), :]                          # (1, NH) f32
    mb1 = bias_ref[pl.ds(B_MB1, 1), :]                          # (1, NH) f32
    mb2 = bias_ref[pl.ds(B_MB2, 1), :]                          # (1, NH) f32

    x = x_ref[...].astype(wdt)                                  # (2T, F)

    # Stacked base-head hidden layer for both sides at once (scaler/PCA folded into Wb1).
    h = jnp.maximum(
        jnp.dot(x, Wb1, preferred_element_type=jnp.float32) + bb1, 0.0)   # (2T, NH) f32

    # "Other side" base hidden = swap the left/right halves of the tile (sublane roll),
    # then fuse own + other contributions into one K = 2*NH contraction against the
    # contiguous [W_own; W_oth] slab rows.
    hh = jnp.concatenate([h, pltpu.roll(h, shift=tq, axis=0)], axis=1).astype(wdt)

    g = (jnp.dot(x, Wm1, preferred_element_type=jnp.float32)
         + jnp.dot(hh, Wmeta, preferred_element_type=jnp.float32)
         + mb1)
    g = jnp.maximum(g, 0.0)                                                # (2T, NH) f32

    # Meta output layer; lane-dense store (only the first NHEAD columns are meaningful).
    out_ref[...] = jnp.dot(g.astype(wdt), mW2,
                           preferred_element_type=jnp.float32) + mb2


def _block_diag_heads(w2_heads):
    """(NHEAD, H) per-head output vectors -> (NHEAD*H, NHEAD) block-diagonal."""
    out = jnp.zeros((NH, NHEAD), jnp.float32)
    for i in range(NHEAD):
        out = out.at[i * H:(i + 1) * H, i].set(w2_heads[i])
    return out


def init_params(key):
    ks = jax.random.split(key, 16)
    p = {}
    # StandardScaler
    p["smean"] = jax.random.normal(ks[0], (1, F), jnp.float32)
    scale = jax.random.uniform(ks[1], (1, F), jnp.float32, minval=0.5, maxval=1.5)
    p["sinv"] = 1.0 / scale
    # PCA
    p["pmean"] = 0.1 * jax.random.normal(ks[2], (1, F), jnp.float32)
    p["pcompT"] = jax.random.normal(ks[3], (F, PC), jnp.float32) / jnp.sqrt(F)
    # 4 base MLP heads: PC -> H -> 1
    p["bW1_h"] = jax.random.normal(ks[4], (NHEAD, PC, H), jnp.float32) / jnp.sqrt(PC)
    p["bb1_h"] = 0.01 * jax.random.normal(ks[5], (NHEAD, H), jnp.float32)
    p["bw2_h"] = jax.random.normal(ks[6], (NHEAD, H), jnp.float32) / jnp.sqrt(H)
    p["bb2_h"] = 0.01 * jax.random.normal(ks[7], (NHEAD,), jnp.float32)
    # 4 meta MLP heads: (PC + 8) -> H -> 1
    d_meta = PC + 2 * NHEAD
    p["mW1_h"] = jax.random.normal(ks[8], (NHEAD, d_meta, H), jnp.float32) / jnp.sqrt(d_meta)
    p["mb1_h"] = 0.01 * jax.random.normal(ks[9], (NHEAD, H), jnp.float32)
    p["mw2_h"] = jax.random.normal(ks[10], (NHEAD, H), jnp.float32) / jnp.sqrt(H)
    p["mb2_h"] = 0.01 * jax.random.normal(ks[11], (NHEAD,), jnp.float32)
    return p


def fold_params(p, weights_dtype=jnp.float32):
    """Host-side algebraic folds -> (weights slab (SLAB_ROWS,NH), f32 bias block (8,NH)).
    Call ONCE and reuse the result for every forward call."""
    # scaler + PCA as a single affine map: xpc = x @ W_pca + b_pca
    W_pca = p["sinv"].T * p["pcompT"]                                   # (F, PC)
    b_pca = -(p["smean"] * p["sinv"] + p["pmean"]) @ p["pcompT"]        # (1, PC)

    # stacked per-head weights
    bW1 = jnp.concatenate([p["bW1_h"][i] for i in range(NHEAD)], axis=1)  # (PC, NH)
    bb1 = p["bb1_h"].reshape(1, NH)
    bW2 = _block_diag_heads(p["bw2_h"])                                   # (NH, NHEAD)
    bb2 = p["bb2_h"].reshape(1, NHEAD)

    mW1 = jnp.concatenate([p["mW1_h"][i] for i in range(NHEAD)], axis=1)  # (PC+8, NH)
    mW1pc, mW1own, mW1oth = mW1[:PC], mW1[PC:PC + NHEAD], mW1[PC + NHEAD:]
    mb1 = p["mb1_h"].reshape(1, NH)
    mW2 = _block_diag_heads(p["mw2_h"])                                   # (NH, NHEAD)
    mb2 = p["mb2_h"].reshape(1, NHEAD)

    # fold PCA into base/meta first layers; fold base second layer into meta first layer
    Wb1 = W_pca @ bW1                                                     # (F, NH)
    bb1p = b_pca @ bW1 + bb1                                              # (1, NH)
    Wm1 = W_pca @ mW1pc                                                   # (F, NH)
    W_own = bW2 @ mW1own                                                  # (NH, NH)
    W_oth = bW2 @ mW1oth                                                  # (NH, NH)
    mb1p = mb1 + bb2 @ mW1own + bb2 @ mW1oth + b_pca @ mW1pc              # (1, NH)

    mW2_pad = jnp.zeros((NH, NH), jnp.float32).at[:, :NHEAD].set(mW2)
    mb2_pad = jnp.zeros((1, NH), jnp.float32).at[:, :NHEAD].set(mb2)

    slab = jnp.zeros((SLAB_ROWS, NH), jnp.float32)
    slab = slab.at[R_WB1:R_WB1 + F].set(Wb1)
    slab = slab.at[R_WM1:R_WM1 + F].set(Wm1)
    slab = slab.at[R_WOWN:R_WOWN + NH].set(W_own)
    slab = slab.at[R_WOTH:R_WOTH + NH].set(W_oth)
    slab = slab.at[R_MW2:R_MW2 + NH].set(mW2_pad)

    bias = jnp.zeros((BIAS_ROWS, NH), jnp.float32)
    bias = bias.at[B_BB1].set(bb1p[0]).at[B_MB1].set(mb1p[0]).at[B_MB2].set(mb2_pad[0])
    return slab.astype(weights_dtype), bias


@jax.jit
def stacked_regressor_forward(X, slab, bias):
    """X: (N, 2F) raw features (cols 0:F = left side, F:2F = right side).
    slab/bias: precomputed once by fold_params.
    Returns (N, 8) = [Fx_l, Fy_l, Fz_l, Tz_l, Fx_r, Fy_r, Fz_r, Tz_r]."""
    n = X.shape[0]
    nb = pl.cdiv(n, TQ)
    n_pad = nb * TQ
    X_l, X_r = X[:, :F], X[:, F:]
    if n_pad != n:
        X_l = jnp.pad(X_l, ((0, n_pad - n), (0, 0)))
        X_r = jnp.pad(X_r, ((0, n_pad - n), (0, 0)))
    # Per-tile row layout: [TQ left rows; TQ right rows] of the SAME samples, so the
    # cross-side term is a sublane roll inside the kernel.
    xb = jnp.concatenate([X_l.reshape(nb, TQ, F), X_r.reshape(nb, TQ, F)], axis=1)

    y_full = pl.pallas_call(
        stacked_regressor_kernel,
        out_shape=jax.ShapeDtypeStruct((nb, 2 * TQ, NH), jnp.float32),
        grid=(nb,),
        in_specs=[
            pl.BlockSpec((None, 2 * TQ, F), lambda i: (i, 0, 0)),     # batch tile
            pl.BlockSpec((SLAB_ROWS, NH), lambda i: (0, 0)),          # resident weights
            pl.BlockSpec((BIAS_ROWS, NH), lambda i: (0, 0)),          # resident biases
        ],
        out_specs=pl.BlockSpec((None, 2 * TQ, NH), lambda i: (i, 0, 0)),
        compiler_params=pltpu.CompilerParams(
            dimension_semantics=("parallel",)),                       # 2 TCs on v7x
    )(xb, slab, bias)

    y = y_full[:, :, :NHEAD]                                          # (nb, 2TQ, 4)
    y_l = y[:, :TQ, :].reshape(n_pad, NHEAD)[:n]
    y_r = y[:, TQ:, :].reshape(n_pad, NHEAD)[:n]
    return jnp.concatenate([y_l, y_r], axis=1)                        # (N, 8)


def folded_reference(X, slab, bias):
    """Pure-JAX math identical to the kernel (same folds, same dtype casts, same K=256
    fusion) — used to validate the Pallas plumbing under bf16 weights."""
    n = X.shape[0]
    x = jnp.concatenate([X[:, :F], X[:, F:]], axis=0)                 # (2n, F) left;right
    wdt = slab.dtype
    xw = x.astype(wdt)
    Wb1, Wm1 = slab[R_WB1:R_WB1 + F], slab[R_WM1:R_WM1 + F]
    Wmeta, mW2 = slab[R_WOWN:R_WOWN + 2 * NH], slab[R_MW2:R_MW2 + NH]
    bb1, mb1, mb2 = bias[B_BB1:B_BB1 + 1], bias[B_MB1:B_MB1 + 1], bias[B_MB2:B_MB2 + 1]
    h = jnp.maximum(jnp.dot(xw, Wb1, preferred_element_type=jnp.float32) + bb1, 0.0)
    h_oth = jnp.concatenate([h[n:], h[:n]], axis=0)
    hh = jnp.concatenate([h, h_oth], axis=1).astype(wdt)
    g = jnp.maximum(jnp.dot(xw, Wm1, preferred_element_type=jnp.float32)
                    + jnp.dot(hh, Wmeta, preferred_element_type=jnp.float32) + mb1, 0.0)
    y = (jnp.dot(g.astype(wdt), mW2, preferred_element_type=jnp.float32) + mb2)[:, :NHEAD]
    return jnp.concatenate([y[:n], y[n:]], axis=1)


def reference_forward(X, p):
    """Pure-JAX spec reference with per-head (unstacked, unfolded) f32 weights."""
    def mlp_head(x, W1, b1, w2, b2):
        h = jnp.maximum(x @ W1 + b1, 0.0)
        return h @ w2[:, None] + b2                                   # (N, 1)

    X_l, X_r = X[:, :F], X[:, F:]

    def pca(x):
        xs = (x - p["smean"]) * p["sinv"]
        return (xs - p["pmean"]) @ p["pcompT"]

    xl_pc, xr_pc = pca(X_l), pca(X_r)

    def base(xpc):
        return jnp.concatenate(
            [mlp_head(xpc, p["bW1_h"][i], p["bb1_h"][i], p["bw2_h"][i], p["bb2_h"][i])
             for i in range(NHEAD)], axis=1)

    base_l, base_r = base(xl_pc), base(xr_pc)
    meta_in_l = jnp.concatenate([xl_pc, base_l, base_r], axis=1)
    meta_in_r = jnp.concatenate([xr_pc, base_r, base_l], axis=1)

    def meta(xin):
        return jnp.concatenate(
            [mlp_head(xin, p["mW1_h"][i], p["mb1_h"][i], p["mw2_h"][i], p["mb2_h"][i])
             for i in range(NHEAD)], axis=1)

    return jnp.concatenate([meta(meta_in_l), meta(meta_in_r)], axis=1)


if __name__ == "__main__":
    key = jax.random.PRNGKey(0)
    kx, kp = jax.random.split(key)
    N_SAMPLES = 200                                     # 2 row tiles + exercises padding
    X = jax.random.normal(kx, (N_SAMPLES, 2 * F), jnp.float32)
    params = init_params(kp)

    # Fold ONCE; reuse the slab/bias for every call (nothing re-folded in the hot path).
    slab_f32, bias = fold_params(params, weights_dtype=jnp.float32)
    slab_bf16 = slab_f32.astype(jnp.bfloat16)

    Y_ref = reference_forward(X, params)

    # f32 weight slab: must match the unfolded spec reference tightly.
    Y = jax.block_until_ready(stacked_regressor_forward(X, slab_f32, bias))
    assert Y.shape == (N_SAMPLES, 2 * NHEAD)
    assert jnp.all(jnp.isfinite(Y))
    assert jnp.allclose(Y, Y_ref, atol=1e-3, rtol=1e-3), (
        f"f32 max abs err {jnp.max(jnp.abs(Y - Y_ref))}")

    # bf16 weight slab (f32 biases + accumulation): validate the Pallas plumbing against
    # identically-quantized pure-JAX math (tight), and loosely against the f32 spec
    # reference (difference = bf16 weight/activation quantization only).
    Y16 = jax.block_until_ready(stacked_regressor_forward(X, slab_bf16, bias))
    assert jnp.all(jnp.isfinite(Y16))
    Y16_ref = folded_reference(X, slab_bf16, bias)
    assert jnp.allclose(Y16, Y16_ref, atol=5e-3, rtol=5e-3), (
        f"bf16 max abs err vs folded ref {jnp.max(jnp.abs(Y16 - Y16_ref))}")
    assert jnp.allclose(Y16, Y_ref, atol=2e-1, rtol=2e-1), (
        f"bf16 max abs err vs spec ref {jnp.max(jnp.abs(Y16 - Y_ref))}")

    print("KERNEL_OK")
</pallas_src>

<mosaic_0001>
module attributes {stable_mosaic.version = 11 : i64} {
  func.func @stacked_regressor_kernel(%arg0: i32, %arg1: memref<1x256x16xf32, #tpu.memory_space<vmem>>, %arg2: memref<416x128xf32, #tpu.memory_space<vmem>>, %arg3: memref<8x128xf32, #tpu.memory_space<vmem>>, %arg4: memref<1x256x128xf32, #tpu.memory_space<vmem>>) attributes {dimension_semantics = [#tpu.dimension_semantics<parallel>], iteration_bounds = array<i64: 2>, scalar_prefetch = 0 : i64, scratch_operands = 0 : i64, tpu.core_type = #tpu.core_type<tc>, window_params = [{transform_indices = @transform_0, window_bounds = array<i64: 1, 256, 16>}, {pipeline_mode = #tpu.pipeline_mode<synchronous>, transform_indices = @transform_1, window_bounds = array<i64: 416, 128>}, {pipeline_mode = #tpu.pipeline_mode<synchronous>, transform_indices = @transform_2, window_bounds = array<i64: 8, 128>}, {transform_indices = @transform_3, window_bounds = array<i64: 1, 256, 128>}]} {
    %c0 = arith.constant 0 : index
    %c0_0 = arith.constant 0 : index
    %0 = vector.load %arg2[%c0, %c0_0] : memref<416x128xf32, #tpu.memory_space<vmem>>, vector<16x128xf32>
    %c16 = arith.constant 16 : index
    %c0_1 = arith.constant 0 : index
    %1 = vector.load %arg2[%c16, %c0_1] : memref<416x128xf32, #tpu.memory_space<vmem>>, vector<16x128xf32>
    %c32 = arith.constant 32 : index
    %c0_2 = arith.constant 0 : index
    %2 = vector.load %arg2[%c32, %c0_2] : memref<416x128xf32, #tpu.memory_space<vmem>>, vector<256x128xf32>
    %c288 = arith.constant 288 : index
    %c0_3 = arith.constant 0 : index
    %3 = vector.load %arg2[%c288, %c0_3] : memref<416x128xf32, #tpu.memory_space<vmem>>, vector<128x128xf32>
    %c0_4 = arith.constant 0 : index
    %c0_5 = arith.constant 0 : index
    %4 = vector.load %arg3[%c0_4, %c0_5] : memref<8x128xf32, #tpu.memory_space<vmem>>, vector<1x128xf32>
    %c1 = arith.constant 1 : index
    %c0_6 = arith.constant 0 : index
    %5 = vector.load %arg3[%c1, %c0_6] : memref<8x128xf32, #tpu.memory_space<vmem>>, vector<1x128xf32>
    %c2 = arith.constant 2 : index
    %c0_7 = arith.constant 0 : index
    %6 = vector.load %arg3[%c2, %c0_7] : memref<8x128xf32, #tpu.memory_space<vmem>>, vector<1x128xf32>
    %c0_8 = arith.constant 0 : index
    %c0_9 = arith.constant 0 : index
    %c0_10 = arith.constant 0 : index
    %7 = vector.load %arg1[%c0_8, %c0_9, %c0_10] : memref<1x256x16xf32, #tpu.memory_space<vmem>>, vector<1x256x16xf32>
    %8 = vector.shape_cast %7 : vector<1x256x16xf32> to vector<256x16xf32>
    %cst = arith.constant dense<0.000000e+00> : vector<256x128xf32>
    %9 = tpu.matmul %8, %0, %cst {dimension_numbers = #tpu.dot_dimension_numbers<[1], [0], [0], [1], [0, 0, 1, 1], [], []>} : vector<256x16xf32>, vector<16x128xf32>, vector<256x128xf32> -> vector<256x128xf32>
    %10 = vector.broadcast %4 : vector<1x128xf32> to vector<256x128xf32>
    %11 = arith.addf %9, %10 : vector<256x128xf32>
    %cst_11 = arith.constant 0.000000e+00 : f32
    %12 = vector.broadcast %cst_11 : f32 to vector<256x128xf32>
    %13 = arith.maximumf %11, %12 : vector<256x128xf32>
    %c128_i32 = arith.constant 128 : i32
    %14 = tpu.dynamic_rotate %13 by %c128_i32 dim 0 : vector<256x128xf32>, i32 -> vector<256x128xf32>
    %15 = tpu.concatenate %13, %14 in 1 : vector<256x128xf32>, vector<256x128xf32> -> vector<256x256xf32>
    %cst_12 = arith.constant dense<0.000000e+00> : vector<256x128xf32>
    %16 = tpu.matmul %8, %1, %cst_12 {dimension_numbers = #tpu.dot_dimension_numbers<[1], [0], [0], [1], [0, 0, 1, 1], [], []>} : vector<256x16xf32>, vector<16x128xf32>, vector<256x128xf32> -> vector<256x128xf32>
    %cst_13 = arith.constant dense<0.000000e+00> : vector<256x128xf32>
    %17 = tpu.matmul %15, %2, %cst_13 {dimension_numbers = #tpu.dot_dimension_numbers<[1], [0], [0], [1], [0, 0, 1, 1], [], []>} : vector<256x256xf32>, vector<256x128xf32>, vector<256x128xf32> -> vector<256x128xf32>
    %18 = arith.addf %16, %17 : vector<256x128xf32>
    %19 = vector.broadcast %5 : vector<1x128xf32> to vector<256x128xf32>
    %20 = arith.addf %18, %19 : vector<256x128xf32>
    %cst_14 = arith.constant 0.000000e+00 : f32
    %21 = vector.broadcast %cst_14 : f32 to vector<256x128xf32>
    %22 = arith.maximumf %20, %21 : vector<256x128xf32>
    %cst_15 = arith.constant dense<0.000000e+00> : vector<256x128xf32>
    %23 = tpu.matmul %22, %3, %cst_15 {dimension_numbers = #tpu.dot_dimension_numbers<[1], [0], [0], [1], [0, 0, 1, 1], [], []>} : vector<256x128xf32>, vector<128x128xf32>, vector<256x128xf32> -> vector<256x128xf32>
    %24 = vector.broadcast %6 : vector<1x128xf32> to vector<256x128xf32>
    %25 = arith.addf %23, %24 : vector<256x128xf32>
    %c0_16 = arith.constant 0 : index
    %c0_17 = arith.constant 0 : index
    %c0_18 = arith.constant 0 : index
    %26 = vector.load %arg4[%c0_16, %c0_17, %c0_18] : memref<1x256x128xf32, #tpu.memory_space<vmem>>, vector<1x256x128xf32>
    %27 = vector.shape_cast %26 : vector<1x256x128xf32> to vector<256x128xf32>
    %28 = vector.shape_cast %25 : vector<256x128xf32> to vector<1x256x128xf32>
    tpu.vector_store %arg4[%c0_16, %c0_17, %c0_18], %28 {strides = array<i32>} : memref<1x256x128xf32, #tpu.memory_space<vmem>>, vector<1x256x128xf32>,
    return
  }
  func.func @transform_0(%arg0: i32) -> (i32, i32, i32) {
    %c0_i32 = arith.constant 0 : i32
    %c0_i32_0 = arith.constant 0 : i32
    %c0_i32_1 = arith.constant 0 : i32
    return %arg0, %c0_i32, %c0_i32_0 : i32, i32, i32
  }
  func.func @transform_1(%arg0: i32) -> (i32, i32) {
    %c0_i32 = arith.constant 0 : i32
    %c0_i32_0 = arith.constant 0 : i32
    %c0_i32_1 = arith.constant 0 : i32
    return %c0_i32, %c0_i32_0 : i32, i32
  }
  func.func @transform_2(%arg0: i32) -> (i32, i32) {
    %c0_i32 = arith.constant 0 : i32
    %c0_i32_0 = arith.constant 0 : i32
    %c0_i32_1 = arith.constant 0 : i32
    return %c0_i32, %c0_i32_0 : i32, i32
  }
  func.func @transform_3(%arg0: i32) -> (i32, i32, i32) {
    %c0_i32 = arith.constant 0 : i32
    %c0_i32_0 = arith.constant 0 : i32
    %c0_i32_1 = arith.constant 0 : i32
    return %arg0, %c0_i32, %c0_i32_0 : i32, i32, i32
  }
}

</mosaic_0001>

<llo_original>
// kernel: stacked_regressor_forward.1
$region0: #{stacked_regressor_forward.1}
  #allocation0 [shape = 'u32[]', space=smem, size = 0x4, offset = 0x4, fixed_abs, tag = 'smem constant byte address 0x4 - core index']
  #allocation1 [shape = 'u32[72,128]{1,0:T(1,128)}', space=vmem, size = 0x9000, scoped, tag = 'internal scratch']
  %s0 = inlined_call_operand.vmem [shape: f32[2,256,16], index: 0, kind: input, shape index: {}]
  %s1 = inlined_call_operand.vmem [shape: f32[416,128], index: 1, kind: input, shape index: {}]
  %s2 = inlined_call_operand.vmem [shape: f32[8,128], index: 2, kind: input, shape index: {}]
  %s3 = inlined_call_operand.vmem [shape: f32[2,256,128], index: 3, kind: output, shape index: {}]
  %s4 = sld [smem:[#allocation0]]
  $region45: #{stacked_regressor_forward.1} parent=0
    _
  %s6 = ssub.s32 1, %s4
  %s7 = scalar_select 0, %s6, %s4
  loop: start=0, step=1, limit=4
  $region2: #{stacked_regressor_forward.1} parent=0 // loop_pre_header
    _
  $region3: #{stacked_regressor_forward.1} parent=0 // loop_header
    %s9 = sphi 0, %s13
    %p10 = scmp.ge.s32.totalorder %s9, 4
    %s19 = sphi 0, %s21
    %s22 = sphi 0, %s19
    %s23 = sphi 0, %s22
    %s39 = sphi 0, %s23
    %s43 = sphi 0, %s43
    %s45 = sphi 0, %s43
    %s46 = sphi 0, %s45
    %s60 = sphi 0, %s46
    %s64 = sphi 0, %s64
    %s66 = sphi 0, %s64
    %s67 = sphi 0, %s66
    %s81 = sphi 0, %s67
    %s87 = sphi 0, %s89
    %s90 = sphi 0, %s87
    %s91 = sphi 0, %s90
    %s107 = sphi 0, %s91
  $region4: #{stacked_regressor_forward.1} parent=0 // loop_header_branch
    %12 = sbr.rel (%p10) target = $region8
  $region5: #{stacked_regressor_forward.1} parent=0 // loop_body
    %s14 = ssub.s32 %s9, 1
    %s15 = ssub.s32 %s9, 2
    %s16 = sadd.s32 %s9, 1
    %s17 = ssub.s32 %s9, %s16
    %p18 = scmp.eq.s32.totalorder %s17, 0
    %s20 = sadd.s32 %s19, 1
    %s21 = scalar_select %p18, %s19, %s20
    %p24 = pneg %p18
    %p25 = scmp.eq.s32.totalorder %s9, 1
    %p26 = por %p24, %p25
    %p27 = scmp.ne.s32.totalorder %s19, %s22
    %p28 = scmp.eq.s32.totalorder %s9, 0
    %p29 = por %p27, %p28
    %p30 = scmp.ne.s32.totalorder %s19, %s22
    %p31 = scmp.eq.s32.totalorder %s14, 1
    %p32 = por %p30, %p31
    %p33 = scmp.ne.s32.totalorder %s22, %s23
    %p34 = scmp.eq.s32.totalorder %s14, 0
    %p35 = por %p33, %p34
    %p36 = scmp.ne.s32.totalorder %s22, %s23
    %p37 = scmp.eq.s32.totalorder %s15, 1
    %p38 = por %p36, %p37
    %p40 = scmp.ne.s32.totalorder %s23, %s39
    %p41 = scmp.eq.s32.totalorder %s15, 0
    %p42 = por %p40, %p41
    %s44 = sadd.s32 %s43, 1
    %p47 = scmp.eq.s32.totalorder %s9, 1
    %p48 = scmp.ne.s32.totalorder %s43, %s45
    %p49 = scmp.eq.s32.totalorder %s9, 0
    %p50 = por %p48, %p49
    %p51 = scmp.ne.s32.totalorder %s43, %s45
    %p52 = scmp.eq.s32.totalorder %s14, 1
    %p53 = por %p51, %p52
    %p54 = scmp.ne.s32.totalorder %s45, %s46
    %p55 = scmp.eq.s32.totalorder %s14, 0
    %p56 = por %p54, %p55
    %p57 = scmp.ne.s32.totalorder %s45, %s46
    %p58 = scmp.eq.s32.totalorder %s15, 1
    %p59 = por %p57, %p58
    %p61 = scmp.ne.s32.totalorder %s46, %s60
    %p62 = scmp.eq.s32.totalorder %s15, 0
    %p63 = por %p61, %p62
    %s65 = sadd.s32 %s64, 1
    %p68 = scmp.eq.s32.totalorder %s9, 1
    %p69 = scmp.ne.s32.totalorder %s64, %s66
    %p70 = scmp.eq.s32.totalorder %s9, 0
    %p71 = por %p69, %p70
    %p72 = scmp.ne.s32.totalorder %s64, %s66
    %p73 = scmp.eq.s32.totalorder %s14, 1
    %p74 = por %p72, %p73
    %p75 = scmp.ne.s32.totalorder %s66, %s67
    %p76 = scmp.eq.s32.totalorder %s14, 0
    %p77 = por %p75, %p76
    %p78 = scmp.ne.s32.totalorder %s66, %s67
    %p79 = scmp.eq.s32.totalorder %s15, 1
    %p80 = por %p78, %p79
    %p82 = scmp.ne.s32.totalorder %s67, %s81
    %p83 = scmp.eq.s32.totalorder %s15, 0
    %p84 = por %p82, %p83
    %s85 = ssub.s32 %s9, %s16
    %p86 = scmp.eq.s32.totalorder %s85, 0
    %s88 = sadd.s32 %s87, 1
    %s89 = scalar_select %p86, %s87, %s88
    %p92 = pneg %p86
    %p93 = scmp.eq.s32.totalorder %s9, 1
    %p94 = por %p92, %p93
    %p95 = scmp.ne.s32.totalorder %s87, %s90
    %p96 = scmp.eq.s32.totalorder %s9, 0
    %p97 = por %p95, %p96
    %p98 = scmp.ne.s32.totalorder %s87, %s90
    %p99 = scmp.eq.s32.totalorder %s14, 1
    %p100 = por %p98, %p99
    %p101 = scmp.ne.s32.totalorder %s90, %s91
    %p102 = scmp.eq.s32.totalorder %s14, 0
    %p103 = por %p101, %p102
    %p104 = scmp.ne.s32.totalorder %s90, %s91
    %p105 = scmp.eq.s32.totalorder %s15, 1
    %p106 = por %p104, %p105
    %p108 = scmp.ne.s32.totalorder %s91, %s107
    %p109 = scmp.eq.s32.totalorder %s15, 0
    %p110 = por %p108, %p109
    %p111 = scmp.le.s32.totalorder 1, %s9
    %p112 = scmp.lt.s32.totalorder %s9, 3
    %p113 = pnand %p111, %p112
    %p114 = pneg %p113
    // Predicated region
    $region9: #{stacked_regressor_forward.1} parent=5 // pred_check
      _
    $region10: #{stacked_regressor_forward.1} parent=5 // pred_check_branch
      %116 = sbr.rel (%p113) target = $region12
    $region11: #{stacked_regressor_forward.1} parent=5 // pred_region
      %s117 = ssub.s32 %s9, 1
      // Predicated region
      $region13: #{stacked_regressor_forward.1} parent=11 // pred_check
        %p118 = pneg %p56
      $region14: #{stacked_regressor_forward.1} parent=11 // pred_check_branch
        %120 = sbr.rel (%p118) target = $region16
      $region15: #{stacked_regressor_forward.1} parent=11 // pred_region
        _
      $region16: #{stacked_regressor_forward.1} parent=11 // pred_fallthru
        _
      // Predicated region
      $region17: #{stacked_regressor_forward.1} parent=11 // pred_check
        %p121 = pneg %p77
      $region18: #{stacked_regressor_forward.1} parent=11 // pred_check_branch
        %123 = sbr.rel (%p121) target = $region20
      $region19: #{stacked_regressor_forward.1} parent=11 // pred_region
        _
      $region20: #{stacked_regressor_forward.1} parent=11 // pred_fallthru
        _
    $region12: #{stacked_regressor_forward.1} parent=5 // pred_fallthru
      _
    %p124 = scmp.lt.s32.totalorder %s9, 2
    // Predicated region
    $region21: #{stacked_regressor_forward.1} parent=5 // pred_check
      %p125 = pneg %p124
    $region22: #{stacked_regressor_forward.1} parent=5 // pred_check_branch
      %127 = sbr.rel (%p125) target = $region24
    $region23: #{stacked_regressor_forward.1} parent=5 // pred_region
      // Predicated region
      $region25: #{stacked_regressor_forward.1} parent=23 // pred_check
        %p128 = pneg %p29
      $region26: #{stacked_regressor_forward.1} parent=23 // pred_check_branch
        %130 = sbr.rel (%p128) target = $region28
      $region27: #{stacked_regressor_forward.1} parent=23 // pred_region
        %p131 = scmp.lt.s32.totalorder %s9, 1
        %s132 = scalar_select %p131, %s9, 1
        %s133 = smul.addr %s132, 32
        %s134 = smul.addr %s133, 8
        %s135 = scalar_lea.vmem %s0, %s134
      $region28: #{stacked_regressor_forward.1} parent=23 // pred_fallthru
        _
    $region24: #{stacked_regressor_forward.1} parent=5 // pred_fallthru
      _
    %p136 = scmp.le.s32.totalorder 1, %s9
    %p137 = scmp.lt.s32.totalorder %s9, 3
    %p138 = pnand %p136, %p137
    %p139 = pneg %p138
    // Predicated region
    $region29: #{stacked_regressor_forward.1} parent=5 // pred_check
      _
    $region30: #{stacked_regressor_forward.1} parent=5 // pred_check_branch
      %141 = sbr.rel (%p138) target = $region32
    $region31: #{stacked_regressor_forward.1} parent=5 // pred_region
      %s142 = ssub.s32 %s9, 1
      %p143 = scmp.lt.s32.totalorder %s14, 1
      %s144 = scalar_select %p143, %s14, 1
      %s145 = smul.addr %s144, 32
      %s146 = smul.addr %s145, 8
      %s147 = scalar_lea.vmem %s0, %s146
      %p148 = pneg %p35
      %p149 = pneg %p32
      %p150 = pneg %p56
      %p151 = pneg %p53
      %p152 = pneg %p77
      %p153 = pneg %p74
      %p154 = pneg %p103
      %p155 = pneg %p100
      %p156 = scmp.lt.s32.totalorder %s14, 1
      %s157 = scalar_select %p156, %s14, 1
      %s158 = smul.addr %s157, 32
      %s159 = smul.addr %s158, 8
      %s160 = scalar_lea.vmem %s3, %s159
      %p161 = scmp.lt.s32.totalorder %s14, 1
      %s162 = scalar_select %p161, %s14, 1
      %s163 = smul.addr %s162, 32
      %s164 = smul.addr %s163, 8
      %s165 = scalar_lea.vmem %s0, %s164
      %p166 = scmp.lt.s32.totalorder %s14, 1
      %s167 = scalar_select %p166, %s14, 1
      %s168 = smul.addr %s167, 32
      %s169 = smul.addr %s168, 8
      %s170 = scalar_lea.vmem %s3, %s169
      %v171 = vld [vmem:[%s1] sm:$0xff]
      %v172 = vld [vmem:[%s1 + $0x8] sm:$0xff]
      %v173 = vld [vmem:[%s1 + $0x10] sm:$0xff]
      %v174 = vld [vmem:[%s1 + $0x18] sm:$0xff]
      %v175 = vld [vmem:[%s1 + $0x20] sm:$0xff]
      %v176 = vld [vmem:[%s1 + $0x28] sm:$0xff]
      %v177 = vld [vmem:[%s1 + $0x30] sm:$0xff]
      %v178 = vld [vmem:[%s1 + $0x38] sm:$0xff]
      %v179 = vld [vmem:[%s1 + $0x40] sm:$0xff]
      %v180 = vld [vmem:[%s1 + $0x48] sm:$0xff]
      %v181 = vld [vmem:[%s1 + $0x50] sm:$0xff]
      %v182 = vld [vmem:[%s1 + $0x58] sm:$0xff]
      %v183 = vld [vmem:[%s1 + $0x60] sm:$0xff]
      %v184 = vld [vmem:[%s1 + $0x68] sm:$0xff]
      %v185 = vld [vmem:[%s1 + $0x70] sm:$0xff]
      %v186 = vld [vmem:[%s1 + $0x78] sm:$0xff]
      %v187 = vld [vmem:[%s1 + $0x80] sm:$0xff]
      %v188 = vld [vmem:[%s1 + $0x88] sm:$0xff]
      %v189 = vld [vmem:[%s1 + $0x90] sm:$0xff]
      %v190 = vld [vmem:[%s1 + $0x98] sm:$0xff]
      %v191 = vld [vmem:[%s1 + $0xa0] sm:$0xff]
      %v192 = vld [vmem:[%s1 + $0xa8] sm:$0xff]
      %v193 = vld [vmem:[%s1 + $0xb0] sm:$0xff]
      %v194 = vld [vmem:[%s1 + $0xb8] sm:$0xff]
      %v195 = vld [vmem:[%s1 + $0xc0] sm:$0xff]
      %v196 = vld [vmem:[%s1 + $0xc8] sm:$0xff]
      %v197 = vld [vmem:[%s1 + $0xd0] sm:$0xff]
      %v198 = vld [vmem:[%s1 + $0xd8] sm:$0xff]
      %v199 = vld [vmem:[%s1 + $0xe0] sm:$0xff]
      %v200 = vld [vmem:[%s1 + $0xe8] sm:$0xff]
      %v201 = vld [vmem:[%s1 + $0xf0] sm:$0xff]
      %v202 = vld [vmem:[%s1 + $0xf8] sm:$0xff]
      %v203 = vld [vmem:[%s1 + $0x100] sm:$0xff]
      %v204 = vld [vmem:[%s1 + $0x108] sm:$0xff]
      %v205 = vld [vmem:[%s1 + $0x110] sm:$0xff]
      %v206 = vld [vmem:[%s1 + $0x118] sm:$0xff]
      %v207 = vld [vmem:[%s1 + $0x120] sm:$0xff]
      %v208 = vld [vmem:[%s1 + $0x128] sm:$0xff]
      %v209 = vld [vmem:[%s1 + $0x130] sm:$0xff]
      %v210 = vld [vmem:[%s1 + $0x138] sm:$0xff]
      %v211 = vld [vmem:[%s1 + $0x140] sm:$0xff]
      %v212 = vld [vmem:[%s1 + $0x148] sm:$0xff]
      %v213 = vld [vmem:[%s1 + $0x150] sm:$0xff]
      %v214 = vld [vmem:[%s1 + $0x158] sm:$0xff]
      %v215 = vld [vmem:[%s1 + $0x160] sm:$0xff]
      %v216 = vld [vmem:[%s1 + $0x168] sm:$0xff]
      %v217 = vld [vmem:[%s1 + $0x170] sm:$0xff]
      %v218 = vld [vmem:[%s1 + $0x178] sm:$0xff]
      %v219 = vld [vmem:[%s1 + $0x180] sm:$0xff]
      %v220 = vld [vmem:[%s1 + $0x188] sm:$0xff]
      %v221 = vld [vmem:[%s1 + $0x190] sm:$0xff]
      %v222 = vld [vmem:[%s1 + $0x198] sm:$0xff]
      %v223 = vld [vmem:[%s2] sm:$0x1]
      %v224 = vld [vmem:[%s2 + $0x1] sm:$0x1]
      %v225 = vld [vmem:[%s2 + $0x2] sm:$0x1]
      %v226 = vld [vmem:[%s165] sm:$0xff]
      %v227 = vld [vmem:[%s165 + $0x8] sm:$0xff]
      %v228 = vld [vmem:[%s165 + $0x10] sm:$0xff]
      %v229 = vld [vmem:[%s165 + $0x18] sm:$0xff]
      %v230 = vld [vmem:[%s165 + $0x20] sm:$0xff]
      %v231 = vld [vmem:[%s165 + $0x28] sm:$0xff]
      %v232 = vld [vmem:[%s165 + $0x30] sm:$0xff]
      %v233 = vld [vmem:[%s165 + $0x38] sm:$0xff]
      %v234 = vld [vmem:[%s165 + $0x40] sm:$0xff]
      %v235 = vld [vmem:[%s165 + $0x48] sm:$0xff]
      %v236 = vld [vmem:[%s165 + $0x50] sm:$0xff]
      %v237 = vld [vmem:[%s165 + $0x58] sm:$0xff]
      %v238 = vld [vmem:[%s165 + $0x60] sm:$0xff]
      %v239 = vld [vmem:[%s165 + $0x68] sm:$0xff]
      %v240 = vld [vmem:[%s165 + $0x70] sm:$0xff]
      %v241 = vld [vmem:[%s165 + $0x78] sm:$0xff]
      %v242 = vld [vmem:[%s165 + $0x80] sm:$0xff]
      %v243 = vld [vmem:[%s165 + $0x88] sm:$0xff]
      %v244 = vld [vmem:[%s165 + $0x90] sm:$0xff]
      %v245 = vld [vmem:[%s165 + $0x98] sm:$0xff]
      %v246 = vld [vmem:[%s165 + $0xa0] sm:$0xff]
      %v247 = vld [vmem:[%s165 + $0xa8] sm:$0xff]
      %v248 = vld [vmem:[%s165 + $0xb0] sm:$0xff]
      %v249 = vld [vmem:[%s165 + $0xb8] sm:$0xff]
      %v250 = vld [vmem:[%s165 + $0xc0] sm:$0xff]
      %v251 = vld [vmem:[%s165 + $0xc8] sm:$0xff]
      %v252 = vld [vmem:[%s165 + $0xd0] sm:$0xff]
      %v253 = vld [vmem:[%s165 + $0xd8] sm:$0xff]
      %v254 = vld [vmem:[%s165 + $0xe0] sm:$0xff]
      %v255 = vld [vmem:[%s165 + $0xe8] sm:$0xff]
      %v256 = vld [vmem:[%s165 + $0xf0] sm:$0xff]
      %v257 = vld [vmem:[%s165 + $0xf8] sm:$0xff]
      %v258 = vperm.slane %v223, 0
      %vm259 = vcmask 130048
      %v261 = vsel %vm259, %v226, 0
      %v264 = vsel %vm259, %v227, 0
      %v267 = vsel %vm259, %v228, 0
      %v270 = vsel %vm259, %v229, 0
      %v273 = vsel %vm259, %v230, 0
      %v276 = vsel %vm259, %v231, 0
      %v279 = vsel %vm259, %v232, 0
      %v282 = vsel %vm259, %v233, 0
      %v285 = vsel %vm259, %v234, 0
      %v288 = vsel %vm259, %v235, 0
      %v291 = vsel %vm259, %v236, 0
      %v294 = vsel %vm259, %v237, 0
      %v297 = vsel %vm259, %v238, 0
      %v300 = vsel %vm259, %v239, 0
      %v303 = vsel %vm259, %v240, 0
      %v306 = vsel %vm259, %v241, 0
      %v309 = vsel %vm259, %v242, 0
      %v312 = vsel %vm259, %v243, 0
      %v315 = vsel %vm259, %v244, 0
      %v318 = vsel %vm259, %v245, 0
      %v321 = vsel %vm259, %v246, 0
      %v324 = vsel %vm259, %v247, 0
      %v327 = vsel %vm259, %v248, 0
      %v330 = vsel %vm259, %v249, 0
      %v333 = vsel %vm259, %v250, 0
      %v336 = vsel %vm259, %v251, 0
      %v339 = vsel %vm259, %v252, 0
      %v342 = vsel %vm259, %v253, 0
      %v345 = vsel %vm259, %v254, 0
      %v348 = vsel %vm259, %v255, 0
      %v351 = vsel %vm259, %v256, 0
      %v354 = vsel %vm259, %v257, 0
      %356 = vmatpush.msra.mxu0 0.0
      %357 = vmatpush.msra.mxu0 0.0
      %358 = vmatpush.msra.mxu0 0.0
      %359 = vmatpush.msra.mxu0 0.0
      %360 = vmatpush.msra.mxu0 0.0
      %361 = vmatpush.msra.mxu0 0.0
      %362 = vmatpush.msra.mxu0 0.0
      %363 = vmatpush.msra.mxu0 0.0
      %364 = vmatpush.msra.mxu0 0.0
      %365 = vmatpush.msra.mxu0 0.0
      %366 = vmatpush.msra.mxu0 0.0
      %367 = vmatpush.msra.mxu0 0.0
      %368 = vmatpush.msra.mxu0 0.0
      %369 = vmatpush.msra.mxu0 0.0
      %370 = vmatpush.msra.mxu0 %v172
      %371 = vmatpush.msra.mxu0 %v171
      %372 = vmatmul.f32.gmra.mxu0 %v261
      %v373 = vpop.f32.mrf.mxu0
      %v374 = vadd.f32 %v258, %v373
      %375 = vmatmul.f32.gmra.mxu0 %v264
      %v376 = vpop.f32.mrf.mxu0
      %v377 = vadd.f32 %v258, %v376
      %378 = vmatmul.f32.gmra.mxu0 %v267
      %v379 = vpop.f32.mrf.mxu0
      %v380 = vadd.f32 %v258, %v379
      %381 = vmatmul.f32.gmra.mxu0 %v270
      %v382 = vpop.f32.mrf.mxu0
      %v383 = vadd.f32 %v258, %v382
      %384 = vmatmul.f32.gmra.mxu0 %v273
      %v385 = vpop.f32.mrf.mxu0
      %v386 = vadd.f32 %v258, %v385
      %387 = vmatmul.f32.gmra.mxu0 %v276
      %v388 = vpop.f32.mrf.mxu0
      %v389 = vadd.f32 %v258, %v388
      %390 = vmatmul.f32.gmra.mxu0 %v279
      %v391 = vpop.f32.mrf.mxu0
      %v392 = vadd.f32 %v258, %v391
      %393 = vmatmul.f32.gmra.mxu0 %v282
      %v394 = vpop.f32.mrf.mxu0
      %v395 = vadd.f32 %v258, %v394
      %396 = vmatmul.f32.gmra.mxu0 %v285
      %v397 = vpop.f32.mrf.mxu0
      %v398 = vadd.f32 %v258, %v397
      %399 = vmatmul.f32.gmra.mxu0 %v288
      %v400 = vpop.f32.mrf.mxu0
      %v401 = vadd.f32 %v258, %v400
      %402 = vmatmul.f32.gmra.mxu0 %v291
      %v403 = vpop.f32.mrf.mxu0
      %v404 = vadd.f32 %v258, %v403
      %405 = vmatmul.f32.gmra.mxu0 %v294
      %v406 = vpop.f32.mrf.mxu0
      %v407 = vadd.f32 %v258, %v406
      %408 = vmatmul.f32.gmra.mxu0 %v297
      %v409 = vpop.f32.mrf.mxu0
      %v410 = vadd.f32 %v258, %v409
      %411 = vmatmul.f32.gmra.mxu0 %v300
      %v412 = vpop.f32.mrf.mxu0
      %v413 = vadd.f32 %v258, %v412
      %414 = vmatmul.f32.gmra.mxu0 %v303
      %v415 = vpop.f32.mrf.mxu0
      %v416 = vadd.f32 %v258, %v415
      %417 = vmatmul.f32.gmra.mxu0 %v306
      %v418 = vpop.f32.mrf.mxu0
      %v419 = vadd.f32 %v258, %v418
      %420 = vmatmul.f32.gmra.mxu0 %v309
      %v421 = vpop.f32.mrf.mxu0
      %v422 = vadd.f32 %v258, %v421
      %423 = vmatmul.f32.gmra.mxu0 %v312
      %v424 = vpop.f32.mrf.mxu0
      %v425 = vadd.f32 %v258, %v424
      %426 = vmatmul.f32.gmra.mxu0 %v315
      %v427 = vpop.f32.mrf.mxu0
      %v428 = vadd.f32 %v258, %v427
      %429 = vmatmul.f32.gmra.mxu0 %v318
      %v430 = vpop.f32.mrf.mxu0
      %v431 = vadd.f32 %v258, %v430
      %432 = vmatmul.f32.gmra.mxu0 %v321
      %v433 = vpop.f32.mrf.mxu0
      %v434 = vadd.f32 %v258, %v433
      %435 = vmatmul.f32.gmra.mxu0 %v324
      %v436 = vpop.f32.mrf.mxu0
      %v437 = vadd.f32 %v258, %v436
      %438 = vmatmul.f32.gmra.mxu0 %v327
      %v439 = vpop.f32.mrf.mxu0
      %v440 = vadd.f32 %v258, %v439
      %441 = vmatmul.f32.gmra.mxu0 %v330
      %v442 = vpop.f32.mrf.mxu0
      %v443 = vadd.f32 %v258, %v442
      %444 = vmatmul.f32.gmra.mxu0 %v333
      %v445 = vpop.f32.mrf.mxu0
      %v446 = vadd.f32 %v258, %v445
      %447 = vmatmul.f32.gmra.mxu0 %v336
      %v448 = vpop.f32.mrf.mxu0
      %v449 = vadd.f32 %v258, %v448
      %450 = vmatmul.f32.gmra.mxu0 %v339
      %v451 = vpop.f32.mrf.mxu0
      %v452 = vadd.f32 %v258, %v451
      %453 = vmatmul.f32.gmra.mxu0 %v342
      %v454 = vpop.f32.mrf.mxu0
      %v455 = vadd.f32 %v258, %v454
      %456 = vmatmul.f32.gmra.mxu0 %v345
      %v457 = vpop.f32.mrf.mxu0
      %v458 = vadd.f32 %v258, %v457
      %459 = vmatmul.f32.gmra.mxu0 %v348
      %v460 = vpop.f32.mrf.mxu0
      %v461 = vadd.f32 %v258, %v460
      %462 = vmatmul.f32.gmra.mxu0 %v351
      %v463 = vpop.f32.mrf.mxu0
      %v464 = vadd.f32 %v258, %v463
      %465 = vmatmul.f32.gmra.mxu0 %v354
      %v466 = vpop.f32.mrf.mxu0
      %v467 = vadd.f32 %v258, %v466
      %468 = vdwg.mxu0
      %v469 = vmax.f32 %v374, 0.0
      %v470 = vmax.f32 %v377, 0.0
      %v471 = vmax.f32 %v380, 0.0
      %v472 = vmax.f32 %v383, 0.0
      %v473 = vmax.f32 %v386, 0.0
      %v474 = vmax.f32 %v389, 0.0
      %v475 = vmax.f32 %v392, 0.0
      %v476 = vmax.f32 %v395, 0.0
      %v477 = vmax.f32 %v398, 0.0
      %v478 = vmax.f32 %v401, 0.0
      %v479 = vmax.f32 %v404, 0.0
      %v480 = vmax.f32 %v407, 0.0
      %v481 = vmax.f32 %v410, 0.0
      %v482 = vmax.f32 %v413, 0.0
      %v483 = vmax.f32 %v416, 0.0
      %v484 = vmax.f32 %v419, 0.0
      %v485 = vmax.f32 %v422, 0.0
      %v486 = vmax.f32 %v425, 0.0
      %v487 = vmax.f32 %v428, 0.0
      %v488 = vmax.f32 %v431, 0.0
      %v489 = vmax.f32 %v434, 0.0
      %v490 = vmax.f32 %v437, 0.0
      %v491 = vmax.f32 %v440, 0.0
      %v492 = vmax.f32 %v443, 0.0
      %v493 = vmax.f32 %v446, 0.0
      %v494 = vmax.f32 %v449, 0.0
      %v495 = vmax.f32 %v452, 0.0
      %v496 = vmax.f32 %v455, 0.0
      %v497 = vmax.f32 %v458, 0.0
      %v498 = vmax.f32 %v461, 0.0
      %v499 = vmax.f32 %v464, 0.0
      %v500 = vmax.f32 %v467, 0.0
      %501 = vmatpush.msra.mxu0 %v190
      %502 = vmatpush.msra.mxu0 %v189
      %503 = vmatpush.msra.mxu0 %v188
      %504 = vmatpush.msra.mxu0 %v187
      %505 = vmatpush.msra.mxu0 %v186
      %506 = vmatpush.msra.mxu0 %v185
      %507 = vmatpush.msra.mxu0 %v184
      %508 = vmatpush.msra.mxu0 %v183
      %509 = vmatpush.msra.mxu0 %v182
      %510 = vmatpush.msra.mxu0 %v181
      %511 = vmatpush.msra.mxu0 %v180
      %512 = vmatpush.msra.mxu0 %v179
      %513 = vmatpush.msra.mxu0 %v178
      %514 = vmatpush.msra.mxu0 %v177
      %515 = vmatpush.msra.mxu0 %v176
      %516 = vmatpush.msra.mxu0 %v175
      %517 = vmatmul.f32.gmra.mxu0 %v469
      %v518 = vpop.f32.mrf.mxu0
      %v519 = vadd.f32 0.0, %v518
      %520 = vmatmul.f32.gmra.mxu0 %v470
      %v521 = vpop.f32.mrf.mxu0
      %v522 = vadd.f32 0.0, %v521
      %523 = vmatmul.f32.gmra.mxu0 %v471
      %v524 = vpop.f32.mrf.mxu0
      %v525 = vadd.f32 0.0, %v524
      %526 = vmatmul.f32.gmra.mxu0 %v472
      %v527 = vpop.f32.mrf.mxu0
      %v528 = vadd.f32 0.0, %v527
      %529 = vmatmul.f32.gmra.mxu0 %v473
      %v530 = vpop.f32.mrf.mxu0
      %v531 = vadd.f32 0.0, %v530
      %532 = vmatmul.f32.gmra.mxu0 %v474
      %v533 = vpop.f32.mrf.mxu0
      %v534 = vadd.f32 0.0, %v533
      %535 = vmatmul.f32.gmra.mxu0 %v475
      %v536 = vpop.f32.mrf.mxu0
      %v537 = vadd.f32 0.0, %v536
      %538 = vmatmul.f32.gmra.mxu0 %v476
      %v539 = vpop.f32.mrf.mxu0
      %v540 = vadd.f32 0.0, %v539
      %541 = vmatmul.f32.gmra.mxu0 %v477
      %v542 = vpop.f32.mrf.mxu0
      %v543 = vadd.f32 0.0, %v542
      %544 = vmatmul.f32.gmra.mxu0 %v478
      %v545 = vpop.f32.mrf.mxu0
      %v546 = vadd.f32 0.0, %v545
      %547 = vmatmul.f32.gmra.mxu0 %v479
      %v548 = vpop.f32.mrf.mxu0
      %v549 = vadd.f32 0.0, %v548
      %550 = vmatmul.f32.gmra.mxu0 %v480
      %v551 = vpop.f32.mrf.mxu0
      %v552 = vadd.f32 0.0, %v551
      %553 = vmatmul.f32.gmra.mxu0 %v481
      %v554 = vpop.f32.mrf.mxu0
      %v555 = vadd.f32 0.0, %v554
      %556 = vmatmul.f32.gmra.mxu0 %v482
      %v557 = vpop.f32.mrf.mxu0
      %v558 = vadd.f32 0.0, %v557
      %559 = vmatmul.f32.gmra.mxu0 %v483
      %v560 = vpop.f32.mrf.mxu0
      %v561 = vadd.f32 0.0, %v560
      %562 = vmatmul.f32.gmra.mxu0 %v484
      %v563 = vpop.f32.mrf.mxu0
      %v564 = vadd.f32 0.0, %v563
      %565 = vmatmul.f32.gmra.mxu0 %v485
      %v566 = vpop.f32.mrf.mxu0
      %v567 = vadd.f32 0.0, %v566
      %568 = vmatmul.f32.gmra.mxu0 %v486
      %v569 = vpop.f32.mrf.mxu0
      %v570 = vadd.f32 0.0, %v569
      %571 = vmatmul.f32.gmra.mxu0 %v487
      %v572 = vpop.f32.mrf.mxu0
      %v573 = vadd.f32 0.0, %v572
      %574 = vmatmul.f32.gmra.mxu0 %v488
      %v575 = vpop.f32.mrf.mxu0
      %v576 = vadd.f32 0.0, %v575
      %577 = vmatmul.f32.gmra.mxu0 %v489
      %v578 = vpop.f32.mrf.mxu0
      %v579 = vadd.f32 0.0, %v578
      %580 = vmatmul.f32.gmra.mxu0 %v490
      %v581 = vpop.f32.mrf.mxu0
      %v582 = vadd.f32 0.0, %v581
      %583 = vmatmul.f32.gmra.mxu0 %v491
      %v584 = vpop.f32.mrf.mxu0
      %v585 = vadd.f32 0.0, %v584
      %586 = vmatmul.f32.gmra.mxu0 %v492
      %v587 = vpop.f32.mrf.mxu0
      %v588 = vadd.f32 0.0, %v587
      %589 = vmatmul.f32.gmra.mxu0 %v493
      %v590 = vpop.f32.mrf.mxu0
      %v591 = vadd.f32 0.0, %v590
      %592 = vmatmul.f32.gmra.mxu0 %v494
      %v593 = vpop.f32.mrf.mxu0
      %v594 = vadd.f32 0.0, %v593
      %595 = vmatmul.f32.gmra.mxu0 %v495
      %v596 = vpop.f32.mrf.mxu0
      %v597 = vadd.f32 0.0, %v596
      %598 = vmatmul.f32.gmra.mxu0 %v496
      %v599 = vpop.f32.mrf.mxu0
      %v600 = vadd.f32 0.0, %v599
      %601 = vmatmul.f32.gmra.mxu0 %v497
      %v602 = vpop.f32.mrf.mxu0
      %v603 = vadd.f32 0.0, %v602
      %604 = vmatmul.f32.gmra.mxu0 %v498
      %v605 = vpop.f32.mrf.mxu0
      %v606 = vadd.f32 0.0, %v605
      %607 = vmatmul.f32.gmra.mxu0 %v499
      %v608 = vpop.f32.mrf.mxu0
      %v609 = vadd.f32 0.0, %v608
      %610 = vmatmul.f32.gmra.mxu0 %v500
      %v611 = vpop.f32.mrf.mxu0
      %v612 = vadd.f32 0.0, %v611
      %613 = vdwg.mxu0
      %614 = vmatpush.msra.mxu0 %v206
      %615 = vmatpush.msra.mxu0 %v205
      %616 = vmatpush.msra.mxu0 %v204
      %617 = vmatpush.msra.mxu0 %v203
      %618 = vmatpush.msra.mxu0 %v202
      %619 = vmatpush.msra.mxu0 %v201
      %620 = vmatpush.msra.mxu0 %v200
      %621 = vmatpush.msra.mxu0 %v199
      %622 = vmatpush.msra.mxu0 %v198
      %623 = vmatpush.msra.mxu0 %v197
      %624 = vmatpush.msra.mxu0 %v196
      %625 = vmatpush.msra.mxu0 %v195
      %626 = vmatpush.msra.mxu0 %v194
      %627 = vmatpush.msra.mxu0 %v193
      %628 = vmatpush.msra.mxu0 %v192
      %629 = vmatpush.msra.mxu0 %v191
      %630 = vmatmul.f32.gmra.mxu0 %v485
      %v631 = vpop.f32.mrf.mxu0
      %v632 = vadd.f32 %v519, %v631
      %633 = vmatmul.f32.gmra.mxu0 %v486
      %v634 = vpop.f32.mrf.mxu0
      %v635 = vadd.f32 %v522, %v634
      %636 = vmatmul.f32.gmra.mxu0 %v487
      %v637 = vpop.f32.mrf.mxu0
      %v638 = vadd.f32 %v525, %v637
      %639 = vmatmul.f32.gmra.mxu0 %v488
      %v640 = vpop.f32.mrf.mxu0
      %v641 = vadd.f32 %v528, %v640
      %642 = vmatmul.f32.gmra.mxu0 %v489
      %v643 = vpop.f32.mrf.mxu0
      %v644 = vadd.f32 %v531, %v643
      %645 = vmatmul.f32.gmra.mxu0 %v490
      %v646 = vpop.f32.mrf.mxu0
      %v647 = vadd.f32 %v534, %v646
      %648 = vmatmul.f32.gmra.mxu0 %v491
      %v649 = vpop.f32.mrf.mxu0
      %v650 = vadd.f32 %v537, %v649
      %651 = vmatmul.f32.gmra.mxu0 %v492
      %v652 = vpop.f32.mrf.mxu0
      %v653 = vadd.f32 %v540, %v652
      %654 = vmatmul.f32.gmra.mxu0 %v493
      %v655 = vpop.f32.mrf.mxu0
      %v656 = vadd.f32 %v543, %v655
      %657 = vmatmul.f32.gmra.mxu0 %v494
      %v658 = vpop.f32.mrf.mxu0
      %v659 = vadd.f32 %v546, %v658
      %660 = vmatmul.f32.gmra.mxu0 %v495
      %v661 = vpop.f32.mrf.mxu0
      %v662 = vadd.f32 %v549, %v661
      %663 = vmatmul.f32.gmra.mxu0 %v496
      %v664 = vpop.f32.mrf.mxu0
      %v665 = vadd.f32 %v552, %v664
      %666 = vmatmul.f32.gmra.mxu0 %v497
      %v667 = vpop.f32.mrf.mxu0
      %v668 = vadd.f32 %v555, %v667
      %669 = vmatmul.f32.gmra.mxu0 %v498
      %v670 = vpop.f32.mrf.mxu0
      %v671 = vadd.f32 %v558, %v670
      %672 = vmatmul.f32.gmra.mxu0 %v499
      %v673 = vpop.f32.mrf.mxu0
      %v674 = vadd.f32 %v561, %v673
      %675 = vmatmul.f32.gmra.mxu0 %v500
      %v676 = vpop.f32.mrf.mxu0
      %v677 = vadd.f32 %v564, %v676
      %678 = vmatmul.f32.gmra.mxu0 %v469
      %v679 = vpop.f32.mrf.mxu0
      %v680 = vadd.f32 %v567, %v679
      %681 = vmatmul.f32.gmra.mxu0 %v470
      %v682 = vpop.f32.mrf.mxu0
      %v683 = vadd.f32 %v570, %v682
      %684 = vmatmul.f32.gmra.mxu0 %v471
      %v685 = vpop.f32.mrf.mxu0
      %v686 = vadd.f32 %v573, %v685
      %687 = vmatmul.f32.gmra.mxu0 %v472
      %v688 = vpop.f32.mrf.mxu0
      %v689 = vadd.f32 %v576, %v688
      %690 = vmatmul.f32.gmra.mxu0 %v473
      %v691 = vpop.f32.mrf.mxu0
      %v692 = vadd.f32 %v579, %v691
      %693 = vmatmul.f32.gmra.mxu0 %v474
      %v694 = vpop.f32.mrf.mxu0
      %v695 = vadd.f32 %v582, %v694
      %696 = vmatmul.f32.gmra.mxu0 %v475
      %v697 = vpop.f32.mrf.mxu0
      %v698 = vadd.f32 %v585, %v697
      %699 = vmatmul.f32.gmra.mxu0 %v476
      %v700 = vpop.f32.mrf.mxu0
      %v701 = vadd.f32 %v588, %v700
      %702 = vmatmul.f32.gmra.mxu0 %v477
      %v703 = vpop.f32.mrf.mxu0
      %v704 = vadd.f32 %v591, %v703
      %705 = vmatmul.f32.gmra.mxu0 %v478
      %v706 = vpop.f32.mrf.mxu0
      %v707 = vadd.f32 %v594, %v706
      %708 = vmatmul.f32.gmra.mxu0 %v479
      %v709 = vpop.f32.mrf.mxu0
      %v710 = vadd.f32 %v597, %v709
      %711 = vmatmul.f32.gmra.mxu0 %v480
      %v712 = vpop.f32.mrf.mxu0
      %v713 = vadd.f32 %v600, %v712
      %714 = vmatmul.f32.gmra.mxu0 %v481
      %v715 = vpop.f32.mrf.mxu0
      %v716 = vadd.f32 %v603, %v715
      %717 = vmatmul.f32.gmra.mxu0 %v482
      %v718 = vpop.f32.mrf.mxu0
      %v719 = vadd.f32 %v606, %v718
      %720 = vmatmul.f32.gmra.mxu0 %v483
      %v721 = vpop.f32.mrf.mxu0
      %v722 = vadd.f32 %v609, %v721
      %723 = vmatmul.f32.gmra.mxu0 %v484
      %v724 = vpop.f32.mrf.mxu0
      %v725 = vadd.f32 %v612, %v724
      %726 = vdwg.mxu0
      %727 = vmatpush.msra.mxu0 0.0
      %728 = vmatpush.msra.mxu0 0.0
      %729 = vmatpush.msra.mxu0 0.0
      %730 = vmatpush.msra.mxu0 0.0
      %731 = vmatpush.msra.mxu0 0.0
      %732 = vmatpush.msra.mxu0 0.0
      %733 = vmatpush.msra.mxu0 0.0
      %734 = vmatpush.msra.mxu0 0.0
      %735 = vmatpush.msra.mxu0 0.0
      %736 = vmatpush.msra.mxu0 0.0
      %737 = vmatpush.msra.mxu0 0.0
      %738 = vmatpush.msra.mxu0 0.0
      %739 = vmatpush.msra.mxu0 0.0
      %740 = vmatpush.msra.mxu0 0.0
      %741 = vmatpush.msra.mxu0 %v174
      %742 = vmatpush.msra.mxu0 %v173
      %743 = vmatmul.f32.gmra.mxu0 %v261
      %v744 = vpop.f32.mrf.mxu0
      %v745 = vadd.f32 %v632, %v744
      %746 = vmatmul.f32.gmra.mxu0 %v264
      %v747 = vpop.f32.mrf.mxu0
      %v748 = vadd.f32 %v635, %v747
      %749 = vmatmul.f32.gmra.mxu0 %v267
      %v750 = vpop.f32.mrf.mxu0
      %v751 = vadd.f32 %v638, %v750
      %752 = vmatmul.f32.gmra.mxu0 %v270
      %v753 = vpop.f32.mrf.mxu0
      %v754 = vadd.f32 %v641, %v753
      %755 = vmatmul.f32.gmra.mxu0 %v273
      %v756 = vpop.f32.mrf.mxu0
      %v757 = vadd.f32 %v644, %v756
      %758 = vmatmul.f32.gmra.mxu0 %v276
      %v759 = vpop.f32.mrf.mxu0
      %v760 = vadd.f32 %v647, %v759
      %761 = vmatmul.f32.gmra.mxu0 %v279
      %v762 = vpop.f32.mrf.mxu0
      %v763 = vadd.f32 %v650, %v762
      %764 = vmatmul.f32.gmra.mxu0 %v282
      %v765 = vpop.f32.mrf.mxu0
      %v766 = vadd.f32 %v653, %v765
      %767 = vmatmul.f32.gmra.mxu0 %v285
      %v768 = vpop.f32.mrf.mxu0
      %v769 = vadd.f32 %v656, %v768
      %770 = vmatmul.f32.gmra.mxu0 %v288
      %v771 = vpop.f32.mrf.mxu0
      %v772 = vadd.f32 %v659, %v771
      %773 = vmatmul.f32.gmra.mxu0 %v291
      %v774 = vpop.f32.mrf.mxu0
      %v775 = vadd.f32 %v662, %v774
      %776 = vmatmul.f32.gmra.mxu0 %v294
      %v777 = vpop.f32.mrf.mxu0
      %v778 = vadd.f32 %v665, %v777
      %779 = vmatmul.f32.gmra.mxu0 %v297
      %v780 = vpop.f32.mrf.mxu0
      %v781 = vadd.f32 %v668, %v780
      %782 = vmatmul.f32.gmra.mxu0 %v300
      %v783 = vpop.f32.mrf.mxu0
      %v784 = vadd.f32 %v671, %v783
      %785 = vmatmul.f32.gmra.mxu0 %v303
      %v786 = vpop.f32.mrf.mxu0
      %v787 = vadd.f32 %v674, %v786
      %788 = vmatmul.f32.gmra.mxu0 %v306
      %v789 = vpop.f32.mrf.mxu0
      %v790 = vadd.f32 %v677, %v789
      %791 = vmatmul.f32.gmra.mxu0 %v309
      %v792 = vpop.f32.mrf.mxu0
      %v793 = vadd.f32 %v680, %v792
      %794 = vmatmul.f32.gmra.mxu0 %v312
      %v795 = vpop.f32.mrf.mxu0
      %v796 = vadd.f32 %v683, %v795
      %797 = vmatmul.f32.gmra.mxu0 %v315
      %v798 = vpop.f32.mrf.mxu0
      %v799 = vadd.f32 %v686, %v798
      %800 = vmatmul.f32.gmra.mxu0 %v318
      %v801 = vpop.f32.mrf.mxu0
      %v802 = vadd.f32 %v689, %v801
      %803 = vmatmul.f32.gmra.mxu0 %v321
      %v804 = vpop.f32.mrf.mxu0
      %v805 = vadd.f32 %v692, %v804
      %806 = vmatmul.f32.gmra.mxu0 %v324
      %v807 = vpop.f32.mrf.mxu0
      %v808 = vadd.f32 %v695, %v807
      %809 = vmatmul.f32.gmra.mxu0 %v327
      %v810 = vpop.f32.mrf.mxu0
      %v811 = vadd.f32 %v698, %v810
      %812 = vmatmul.f32.gmra.mxu0 %v330
      %v813 = vpop.f32.mrf.mxu0
      %v814 = vadd.f32 %v701, %v813
      %815 = vmatmul.f32.gmra.mxu0 %v333
      %v816 = vpop.f32.mrf.mxu0
      %v817 = vadd.f32 %v704, %v816
      %818 = vmatmul.f32.gmra.mxu0 %v336
      %v819 = vpop.f32.mrf.mxu0
      %v820 = vadd.f32 %v707, %v819
      %821 = vmatmul.f32.gmra.mxu0 %v339
      %v822 = vpop.f32.mrf.mxu0
      %v823 = vadd.f32 %v710, %v822
      %824 = vmatmul.f32.gmra.mxu0 %v342
      %v825 = vpop.f32.mrf.mxu0
      %v826 = vadd.f32 %v713, %v825
      %827 = vmatmul.f32.gmra.mxu0 %v345
      %v828 = vpop.f32.mrf.mxu0
      %v829 = vadd.f32 %v716, %v828
      %830 = vmatmul.f32.gmra.mxu0 %v348
      %v831 = vpop.f32.mrf.mxu0
      %v832 = vadd.f32 %v719, %v831
      %833 = vmatmul.f32.gmra.mxu0 %v351
      %v834 = vpop.f32.mrf.mxu0
      %v835 = vadd.f32 %v722, %v834
      %836 = vmatmul.f32.gmra.mxu0 %v354
      %v837 = vpop.f32.mrf.mxu0
      %v838 = vadd.f32 %v725, %v837
      %839 = vdwg.mxu0
      %v840 = vperm.slane %v224, 0
      %v841 = vadd.f32 %v745, %v840
      %v842 = vadd.f32 %v748, %v840
      %v843 = vadd.f32 %v751, %v840
      %v844 = vadd.f32 %v754, %v840
      %v845 = vadd.f32 %v757, %v840
      %v846 = vadd.f32 %v760, %v840
      %v847 = vadd.f32 %v763, %v840
      %v848 = vadd.f32 %v766, %v840
      %v849 = vadd.f32 %v769, %v840
      %v850 = vadd.f32 %v772, %v840
      %v851 = vadd.f32 %v775, %v840
      %v852 = vadd.f32 %v778, %v840
      %v853 = vadd.f32 %v781, %v840
      %v854 = vadd.f32 %v784, %v840
      %v855 = vadd.f32 %v787, %v840
      %v856 = vadd.f32 %v790, %v840
      %v857 = vadd.f32 %v793, %v840
      %v858 = vadd.f32 %v796, %v840
      %v859 = vadd.f32 %v799, %v840
      %v860 = vadd.f32 %v802, %v840
      %v861 = vadd.f32 %v805, %v840
      %v862 = vadd.f32 %v808, %v840
      %v863 = vadd.f32 %v811, %v840
      %v864 = vadd.f32 %v814, %v840
      %v865 = vadd.f32 %v817, %v840
      %v866 = vadd.f32 %v820, %v840
      %v867 = vadd.f32 %v823, %v840
      %v868 = vadd.f32 %v826, %v840
      %v869 = vadd.f32 %v829, %v840
      %v870 = vadd.f32 %v832, %v840
      %v871 = vadd.f32 %v835, %v840
      %v872 = vadd.f32 %v838, %v840
      %v873 = vmax.f32 %v841, 0.0
      %v874 = vmax.f32 %v842, 0.0
      %v875 = vmax.f32 %v843, 0.0
      %v876 = vmax.f32 %v844, 0.0
      %v877 = vmax.f32 %v845, 0.0
      %v878 = vmax.f32 %v846, 0.0
      %v879 = vmax.f32 %v847, 0.0
      %v880 = vmax.f32 %v848, 0.0
      %v881 = vmax.f32 %v849, 0.0
      %v882 = vmax.f32 %v850, 0.0
      %v883 = vmax.f32 %v851, 0.0
      %v884 = vmax.f32 %v852, 0.0
      %v885 = vmax.f32 %v853, 0.0
      %v886 = vmax.f32 %v854, 0.0
      %v887 = vmax.f32 %v855, 0.0
      %v888 = vmax.f32 %v856, 0.0
      %v889 = vmax.f32 %v857, 0.0
      %v890 = vmax.f32 %v858, 0.0
      %v891 = vmax.f32 %v859, 0.0
      %v892 = vmax.f32 %v860, 0.0
      %v893 = vmax.f32 %v861, 0.0
      %v894 = vmax.f32 %v862, 0.0
      %v895 = vmax.f32 %v863, 0.0
      %v896 = vmax.f32 %v864, 0.0
      %v897 = vmax.f32 %v865, 0.0
      %v898 = vmax.f32 %v866, 0.0
      %v899 = vmax.f32 %v867, 0.0
      %v900 = vmax.f32 %v868, 0.0
      %v901 = vmax.f32 %v869, 0.0
      %v902 = vmax.f32 %v870, 0.0
      %v903 = vmax.f32 %v871, 0.0
      %v904 = vmax.f32 %v872, 0.0
      %v905 = vperm.slane %v225, 0
      %906 = vmatpush.msra.mxu0 %v222
      %907 = vmatpush.msra.mxu0 %v221
      %908 = vmatpush.msra.mxu0 %v220
      %909 = vmatpush.msra.mxu0 %v219
      %910 = vmatpush.msra.mxu0 %v218
      %911 = vmatpush.msra.mxu0 %v217
      %912 = vmatpush.msra.mxu0 %v216
      %913 = vmatpush.msra.mxu0 %v215
      %914 = vmatpush.msra.mxu0 %v214
      %915 = vmatpush.msra.mxu0 %v213
      %916 = vmatpush.msra.mxu0 %v212
      %917 = vmatpush.msra.mxu0 %v211
      %918 = vmatpush.msra.mxu0 %v210
      %919 = vmatpush.msra.mxu0 %v209
      %920 = vmatpush.msra.mxu0 %v208
      %921 = vmatpush.msra.mxu0 %v207
      %922 = vmatmul.f32.gmra.mxu0 %v873
      %v923 = vpop.f32.mrf.mxu0
      %v924 = vadd.f32 %v905, %v923
      %925 = vmatmul.f32.gmra.mxu0 %v874
      %v926 = vpop.f32.mrf.mxu0
      %v927 = vadd.f32 %v905, %v926
      %928 = vmatmul.f32.gmra.mxu0 %v875
      %v929 = vpop.f32.mrf.mxu0
      %v930 = vadd.f32 %v905, %v929
      %931 = vmatmul.f32.gmra.mxu0 %v876
      %v932 = vpop.f32.mrf.mxu0
      %v933 = vadd.f32 %v905, %v932
      %934 = vmatmul.f32.gmra.mxu0 %v877
      %v935 = vpop.f32.mrf.mxu0
      %v936 = vadd.f32 %v905, %v935
      %937 = vmatmul.f32.gmra.mxu0 %v878
      %v938 = vpop.f32.mrf.mxu0
      %v939 = vadd.f32 %v905, %v938
      %940 = vmatmul.f32.gmra.mxu0 %v879
      %v941 = vpop.f32.mrf.mxu0
      %v942 = vadd.f32 %v905, %v941
      %943 = vmatmul.f32.gmra.mxu0 %v880
      %v944 = vpop.f32.mrf.mxu0
      %v945 = vadd.f32 %v905, %v944
      %946 = vmatmul.f32.gmra.mxu0 %v881
      %v947 = vpop.f32.mrf.mxu0
      %v948 = vadd.f32 %v905, %v947
      %949 = vmatmul.f32.gmra.mxu0 %v882
      %v950 = vpop.f32.mrf.mxu0
      %v951 = vadd.f32 %v905, %v950
      %952 = vmatmul.f32.gmra.mxu0 %v883
      %v953 = vpop.f32.mrf.mxu0
      %v954 = vadd.f32 %v905, %v953
      %955 = vmatmul.f32.gmra.mxu0 %v884
      %v956 = vpop.f32.mrf.mxu0
      %v957 = vadd.f32 %v905, %v956
      %958 = vmatmul.f32.gmra.mxu0 %v885
      %v959 = vpop.f32.mrf.mxu0
      %v960 = vadd.f32 %v905, %v959
      %961 = vmatmul.f32.gmra.mxu0 %v886
      %v962 = vpop.f32.mrf.mxu0
      %v963 = vadd.f32 %v905, %v962
      %964 = vmatmul.f32.gmra.mxu0 %v887
      %v965 = vpop.f32.mrf.mxu0
      %v966 = vadd.f32 %v905, %v965
      %967 = vmatmul.f32.gmra.mxu0 %v888
      %v968 = vpop.f32.mrf.mxu0
      %v969 = vadd.f32 %v905, %v968
      %970 = vmatmul.f32.gmra.mxu0 %v889
      %v971 = vpop.f32.mrf.mxu0
      %v972 = vadd.f32 %v905, %v971
      %973 = vmatmul.f32.gmra.mxu0 %v890
      %v974 = vpop.f32.mrf.mxu0
      %v975 = vadd.f32 %v905, %v974
      %976 = vmatmul.f32.gmra.mxu0 %v891
      %v977 = vpop.f32.mrf.mxu0
      %v978 = vadd.f32 %v905, %v977
      %979 = vmatmul.f32.gmra.mxu0 %v892
      %v980 = vpop.f32.mrf.mxu0
      %v981 = vadd.f32 %v905, %v980
      %982 = vmatmul.f32.gmra.mxu0 %v893
      %v983 = vpop.f32.mrf.mxu0
      %v984 = vadd.f32 %v905, %v983
      %985 = vmatmul.f32.gmra.mxu0 %v894
      %v986 = vpop.f32.mrf.mxu0
      %v987 = vadd.f32 %v905, %v986
      %988 = vmatmul.f32.gmra.mxu0 %v895
      %v989 = vpop.f32.mrf.mxu0
      %v990 = vadd.f32 %v905, %v989
      %991 = vmatmul.f32.gmra.mxu0 %v896
      %v992 = vpop.f32.mrf.mxu0
      %v993 = vadd.f32 %v905, %v992
      %994 = vmatmul.f32.gmra.mxu0 %v897
      %v995 = vpop.f32.mrf.mxu0
      %v996 = vadd.f32 %v905, %v995
      %997 = vmatmul.f32.gmra.mxu0 %v898
      %v998 = vpop.f32.mrf.mxu0
      %v999 = vadd.f32 %v905, %v998
      %1000 = vmatmul.f32.gmra.mxu0 %v899
      %v1001 = vpop.f32.mrf.mxu0
      %v1002 = vadd.f32 %v905, %v1001
      %1003 = vmatmul.f32.gmra.mxu0 %v900
      %v1004 = vpop.f32.mrf.mxu0
      %v1005 = vadd.f32 %v905, %v1004
      %1006 = vmatmul.f32.gmra.mxu0 %v901
      %v1007 = vpop.f32.mrf.mxu0
      %v1008 = vadd.f32 %v905, %v1007
      %1009 = vmatmul.f32.gmra.mxu0 %v902
      %v1010 = vpop.f32.mrf.mxu0
      %v1011 = vadd.f32 %v905, %v1010
      %1012 = vmatmul.f32.gmra.mxu0 %v903
      %v1013 = vpop.f32.mrf.mxu0
      %v1014 = vadd.f32 %v905, %v1013
      %1015 = vmatmul.f32.gmra.mxu0 %v904
      %v1016 = vpop.f32.mrf.mxu0
      %v1017 = vadd.f32 %v905, %v1016
      %1018 = vdwg.mxu0
      %1019 = vst [vmem:[%s170] sm:$0xff] %v924
      %1020 = vst [vmem:[%s170 + $0x8] sm:$0xff] %v927
      %1021 = vst [vmem:[%s170 + $0x10] sm:$0xff] %v930
      %1022 = vst [vmem:[%s170 + $0x18] sm:$0xff] %v933
      %1023 = vst [vmem:[%s170 + $0x20] sm:$0xff] %v936
      %1024 = vst [vmem:[%s170 + $0x28] sm:$0xff] %v939
      %1025 = vst [vmem:[%s170 + $0x30] sm:$0xff] %v942
      %1026 = vst [vmem:[%s170 + $0x38] sm:$0xff] %v945
      %1027 = vst [vmem:[%s170 + $0x40] sm:$0xff] %v948
      %1028 = vst [vmem:[%s170 + $0x48] sm:$0xff] %v951
      %1029 = vst [vmem:[%s170 + $0x50] sm:$0xff] %v954
      %1030 = vst [vmem:[%s170 + $0x58] sm:$0xff] %v957
      %1031 = vst [vmem:[%s170 + $0x60] sm:$0xff] %v960
      %1032 = vst [vmem:[%s170 + $0x68] sm:$0xff] %v963
      %1033 = vst [vmem:[%s170 + $0x70] sm:$0xff] %v966
      %1034 = vst [vmem:[%s170 + $0x78] sm:$0xff] %v969
      %1035 = vst [vmem:[%s170 + $0x80] sm:$0xff] %v972
      %1036 = vst [vmem:[%s170 + $0x88] sm:$0xff] %v975
      %1037 = vst [vmem:[%s170 + $0x90] sm:$0xff] %v978
      %1038 = vst [vmem:[%s170 + $0x98] sm:$0xff] %v981
      %1039 = vst [vmem:[%s170 + $0xa0] sm:$0xff] %v984
      %1040 = vst [vmem:[%s170 + $0xa8] sm:$0xff] %v987
      %1041 = vst [vmem:[%s170 + $0xb0] sm:$0xff] %v990
      %1042 = vst [vmem:[%s170 + $0xb8] sm:$0xff] %v993
      %1043 = vst [vmem:[%s170 + $0xc0] sm:$0xff] %v996
      %1044 = vst [vmem:[%s170 + $0xc8] sm:$0xff] %v999
      %1045 = vst [vmem:[%s170 + $0xd0] sm:$0xff] %v1002
      %1046 = vst [vmem:[%s170 + $0xd8] sm:$0xff] %v1005
      %1047 = vst [vmem:[%s170 + $0xe0] sm:$0xff] %v1008
      %1048 = vst [vmem:[%s170 + $0xe8] sm:$0xff] %v1011
      %1049 = vst [vmem:[%s170 + $0xf0] sm:$0xff] %v1014
      %1050 = vst [vmem:[%s170 + $0xf8] sm:$0xff] %v1017
      %p1051 = scmp.lt.s32.totalorder %s14, 1
      %s1052 = scalar_select %p1051, %s14, 1
      %s1053 = smul.addr %s1052, 32
      %s1054 = smul.addr %s1053, 8
      %s1055 = scalar_lea.vmem %s3, %s1054
      // Predicated region
      $region33: #{stacked_regressor_forward.1} parent=31 // pred_check
        %p1056 = pneg %p100
      $region34: #{stacked_regressor_forward.1} parent=31 // pred_check_branch
        %1058 = sbr.rel (%p1056) target = $region36
      $region35: #{stacked_regressor_forward.1} parent=31 // pred_region
        _
      $region36: #{stacked_regressor_forward.1} parent=31 // pred_fallthru
        _
    $region32: #{stacked_regressor_forward.1} parent=5 // pred_fallthru
      _
    %p1059 = scmp.le.s32.totalorder 2, %s9
    // Predicated region
    $region37: #{stacked_regressor_forward.1} parent=5 // pred_check
      %p1060 = pneg %p1059
    $region38: #{stacked_regressor_forward.1} parent=5 // pred_check_branch
      %1062 = sbr.rel (%p1060) target = $region40
    $region39: #{stacked_regressor_forward.1} parent=5 // pred_region
      %s1063 = ssub.s32 %s9, 2
      // Predicated region
      $region41: #{stacked_regressor_forward.1} parent=39 // pred_check
        %p1064 = pneg %p106
      $region42: #{stacked_regressor_forward.1} parent=39 // pred_check_branch
        %1066 = sbr.rel (%p1064) target = $region44
      $region43: #{stacked_regressor_forward.1} parent=39 // pred_region
        %p1067 = scmp.lt.s32.totalorder %s15, 1
        %s1068 = scalar_select %p1067, %s15, 1
        %s1069 = smul.addr %s1068, 32
        %s1070 = smul.addr %s1069, 8
        %s1071 = scalar_lea.vmem %s3, %s1070
      $region44: #{stacked_regressor_forward.1} parent=39 // pred_fallthru
        _
    $region40: #{stacked_regressor_forward.1} parent=5 // pred_fallthru
      _
  $region6: #{stacked_regressor_forward.1} parent=0 // loop_footer
    %s13 = sadd.s32 1, %s9
  $region7: #{stacked_regressor_forward.1} parent=0 // loop_footer_branch
    %8 = sbr.rel target = $region3
  $region8: #{stacked_regressor_forward.1} parent=0 // loop_exit
    _

</llo_original>
